<compile_context>
chip_gen: v6e
topology: v6e:2x2x1
jax: 0.10.0
libtpu: 0.0.40
codegen_flags: <defaults>
</compile_context>

<pallas_src>
import jax
import jax.numpy as jnp
from jax.experimental import pallas as pl
from jax.experimental.pallas import tpu as pltpu


def _round_up(n: int, m: int) -> int:
    return ((n + m - 1) // m) * m


# ---------------------------------------------------------------------------
# Kernels
# ---------------------------------------------------------------------------
def _kernel_train(x_ref, w1_ref, b1_ref, w2_ref, b2_ref, o_ref):
    # Cast x to the MXU operand dtype in-kernel (no separate HBM pad/cast pass).
    x = x_ref[...].astype(w1_ref.dtype)
    h = jnp.dot(x, w1_ref[...], preferred_element_type=jnp.float32)
    h = jnp.maximum(h + b1_ref[...], 0.0)          # bias + ReLU in f32 (VPU)
    h = jnp.dot(h.astype(w2_ref.dtype), w2_ref[...],
                preferred_element_type=jnp.float32)
    h = jnp.maximum(h + b2_ref[...], 0.0)
    o_ref[...] = h.astype(o_ref.dtype)


def _kernel_eval(x_ref, w1_ref, b1_ref, o_ref):
    x = x_ref[...].astype(w1_ref.dtype)
    h = jnp.dot(x, w1_ref[...], preferred_element_type=jnp.float32)
    o_ref[...] = jnp.maximum(h + b1_ref[...], 0.0).astype(o_ref.dtype)


# ---------------------------------------------------------------------------
# One-time parameter preparation (do at load time, NOT per forward call)
# ---------------------------------------------------------------------------
def prepare_params(w1, b1, w2, b2, *, compute_dtype=jnp.bfloat16):
    """Transpose torch nn.Linear weights ([out,in] -> [in,out]), cast matmul
    operands to bf16, keep biases in f32 as [1, H] rows. No padding needed:
    weight blocks are full-extent, so any H_in / H_out is legal."""
    H_out, H_in = w1.shape
    return dict(
        w1=jnp.asarray(w1, compute_dtype).T,
        w2=jnp.asarray(w2, compute_dtype).T,
        b1=jnp.asarray(b1, jnp.float32).reshape(1, H_out),
        b2=jnp.asarray(b2, jnp.float32).reshape(1, H_out),
        H_in=H_in, H_out=H_out, compute_dtype=compute_dtype)


# ---------------------------------------------------------------------------
# Helpers
# ---------------------------------------------------------------------------
def _vmem_capacity_bytes() -> int:
    try:
        return int(pltpu.get_tpu_info().vmem_capacity_bytes)
    except Exception:
        return 64 * 1024 * 1024   # v7x per-TensorCore: the tightest generation


def _resident_spec(shape):
    """Constant-index (grid-invariant) operand: single-buffer it so resident
    weights/biases cost 1x (not 2x) VMEM."""
    index_map = lambda i: (0,) * len(shape)
    try:
        return pl.BlockSpec(shape, index_map, pipeline_mode=pl.Buffered(1))
    except Exception:   # older jax without pipeline_mode / Buffered
        return pl.BlockSpec(shape, index_map)


# ---------------------------------------------------------------------------
# Forward wrapper
# ---------------------------------------------------------------------------
def utterance_extractor_forward(x, params, *, training: bool, block_m: int = 1024,
                                out_dtype=None, use_pallas=None):
    """x: [B, H_in]; params: output of prepare_params; training must be a
    static Python bool (selects which kernel is traced)."""
    assert isinstance(training, bool), "training must be a static Python bool"
    B, H_in = x.shape
    assert H_in == params["H_in"], "input feature size mismatch"
    H_out = params["H_out"]
    cdt = params["compute_dtype"]
    out_dtype = x.dtype if out_dtype is None else out_dtype

    if use_pallas is None:
        # Tiny problems are pure launch/step overhead for a Pallas call; a
        # fused XLA dot wins there. The Pallas path wins once HBM-roofline bound.
        use_pallas = B * max(H_in, H_out) >= (1 << 16)
    if not use_pallas:
        h = jnp.maximum(jnp.dot(x.astype(cdt), params["w1"],
                                preferred_element_type=jnp.float32)
                        + params["b1"], 0.0)
        if training:
            h = jnp.maximum(jnp.dot(h.astype(cdt), params["w2"],
                                    preferred_element_type=jnp.float32)
                            + params["b2"], 0.0)
        return h.astype(out_dtype)

    # --- VMEM budgeting: v7x has 64 MiB physical per core; v5e's default
    # scoped limit is only 16 MiB, so set vmem_limit_bytes explicitly. ---
    vmem_cap = _vmem_capacity_bytes()
    x_b = jnp.dtype(x.dtype).itemsize
    o_b = jnp.dtype(out_dtype).itemsize
    w_b = jnp.dtype(cdt).itemsize
    weight_bytes = H_in * H_out * w_b + (H_out * H_out * w_b if training else 0)
    bias_bytes = (2 if training else 1) * H_out * 4
    # double-buffered x tile + double-buffered out tile + ~2 live f32 temporaries
    per_row = 2 * H_in * x_b + 2 * H_out * o_b + 2 * H_out * 4
    tile_budget = max(int(0.4 * vmem_cap) - weight_bytes - bias_bytes,
                      8 * per_row)
    tm = min(block_m, tile_budget // per_row)
    if tm >= B:
        tm = B                       # single block; a full-dim block needs no 8-align
    else:
        tm = max((tm // 8) * 8, 8)   # sublane-aligned batch tile
    grid = (pl.cdiv(B, tm),)         # partial last block: padded reads, masked writes

    need = weight_bytes + bias_bytes + tm * per_row
    vmem_limit = int(min(0.75 * vmem_cap, max(2 * need, 32 * 1024 * 1024)))

    # x/out are streamed (default double-buffered); weights/biases are resident.
    # TODO(synk): optionally sweep pipeline_mode=pl.Buffered(3) on x/out after
    # measuring DMA exposure — expected <5% either way.
    x_spec = pl.BlockSpec((tm, H_in), lambda i: (i, 0))
    out_spec = pl.BlockSpec((tm, H_out), lambda i: (i, 0))
    w1_spec = _resident_spec((H_in, H_out))
    w2_spec = _resident_spec((H_out, H_out))
    b_spec = _resident_spec((1, H_out))

    cparams = pltpu.CompilerParams(dimension_semantics=("parallel",),
                                   vmem_limit_bytes=vmem_limit)
    out_shape = jax.ShapeDtypeStruct((B, H_out), out_dtype)

    if training:
        return pl.pallas_call(
            _kernel_train,
            out_shape=out_shape,
            grid_spec=pltpu.PrefetchScalarGridSpec(
                num_scalar_prefetch=0, grid=grid,
                in_specs=[x_spec, w1_spec, b_spec, w2_spec, b_spec],
                out_specs=out_spec),
            compiler_params=cparams,
        )(x, params["w1"], params["b1"], params["w2"], params["b2"])

    # Eval mode: linear2 is never applied -> do not pass / DMA w2, b2.
    return pl.pallas_call(
        _kernel_eval,
        out_shape=out_shape,
        grid_spec=pltpu.PrefetchScalarGridSpec(
            num_scalar_prefetch=0, grid=grid,
            in_specs=[x_spec, w1_spec, b_spec],
            out_specs=out_spec),
        compiler_params=cparams,
    )(x, params["w1"], params["b1"])


# ---------------------------------------------------------------------------
# Pure-JAX reference
# ---------------------------------------------------------------------------
def _reference(x, w1, b1, w2, b2, training):
    h = jnp.maximum(x @ w1.T + b1, 0.0)
    if training:
        h = jnp.maximum(h @ w2.T + b2, 0.0)
    return h


if __name__ == "__main__":
    # Deterministic synthetic params / inputs (torch nn.Linear shapes).
    batch = 200            # small, but > one tile so the grid + remainder paths run
    input_size = 40
    output_size = 32

    key = jax.random.PRNGKey(0)
    kx, kw1, kb1, kw2, kb2 = jax.random.split(key, 5)

    x = jax.random.normal(kx, (batch, input_size), dtype=jnp.float32)
    w1 = jax.random.normal(kw1, (output_size, input_size), jnp.float32) * 0.1
    b1 = jax.random.normal(kb1, (output_size,), jnp.float32) * 0.1
    w2 = jax.random.normal(kw2, (output_size, output_size), jnp.float32) * 0.1
    b2 = jax.random.normal(kb2, (output_size,), jnp.float32) * 0.1

    # One-time parameter prep (transpose + bf16 cast).
    params = prepare_params(w1, b1, w2, b2)

    # Force the Pallas path (the auto-heuristic would route shapes this tiny to
    # plain XLA); block_m=64 exercises a 4-step grid with a masked final block.
    out_train = utterance_extractor_forward(x, params, training=True,
                                            block_m=64, use_pallas=True)
    out_eval = utterance_extractor_forward(x, params, training=False,
                                           block_m=64, use_pallas=True)
    # bf16-output variant (halves output HBM writeback on bandwidth-bound sizes).
    out_bf16 = utterance_extractor_forward(x, params, training=True,
                                           block_m=64, use_pallas=True,
                                           out_dtype=jnp.bfloat16)
    jax.block_until_ready((out_train, out_eval, out_bf16))

    ref_train = _reference(x, w1, b1, w2, b2, True)
    ref_eval = _reference(x, w1, b1, w2, b2, False)

    assert out_train.shape == (batch, output_size) and out_train.dtype == x.dtype
    assert out_eval.shape == (batch, output_size)
    assert out_bf16.shape == (batch, output_size) and out_bf16.dtype == jnp.bfloat16
    # bf16 MXU operands with f32 accumulation -> relaxed tolerance.
    assert jnp.allclose(out_train, ref_train, atol=2e-2, rtol=2e-2)
    assert jnp.allclose(out_eval, ref_eval, atol=2e-2, rtol=2e-2)
    assert jnp.allclose(out_bf16.astype(jnp.float32), ref_train, atol=6e-2, rtol=6e-2)

    print("KERNEL_OK")
</pallas_src>

<mosaic_0001>
module attributes {stable_mosaic.version = 11 : i64} {
  func.func @_kernel_train(%arg0: i32, %arg1: memref<64x40xf32, #tpu.memory_space<vmem>>, %arg2: memref<40x32xbf16, #tpu.memory_space<vmem>>, %arg3: memref<1x32xf32, #tpu.memory_space<vmem>>, %arg4: memref<32x32xbf16, #tpu.memory_space<vmem>>, %arg5: memref<1x32xf32, #tpu.memory_space<vmem>>, %arg6: memref<64x32xf32, #tpu.memory_space<vmem>>) attributes {dimension_semantics = [#tpu.dimension_semantics<parallel>], iteration_bounds = array<i64: 4>, scalar_prefetch = 0 : i64, scratch_operands = 0 : i64, tpu.core_type = #tpu.core_type<tc>, window_params = [{transform_indices = @transform_0, window_bounds = array<i64: 64, 40>}, {pipeline_mode = #tpu.pipeline_mode<synchronous>, transform_indices = @transform_1, window_bounds = array<i64: 40, 32>}, {pipeline_mode = #tpu.pipeline_mode<synchronous>, transform_indices = @transform_2, window_bounds = array<i64: 1, 32>}, {pipeline_mode = #tpu.pipeline_mode<synchronous>, transform_indices = @transform_3, window_bounds = array<i64: 32, 32>}, {pipeline_mode = #tpu.pipeline_mode<synchronous>, transform_indices = @transform_4, window_bounds = array<i64: 1, 32>}, {transform_indices = @transform_5, window_bounds = array<i64: 64, 32>}]} {
    %c0 = arith.constant 0 : index
    %c0_0 = arith.constant 0 : index
    %0 = vector.load %arg1[%c0, %c0_0] : memref<64x40xf32, #tpu.memory_space<vmem>>, vector<64x40xf32>
    %1 = arith.truncf %0 : vector<64x40xf32> to vector<64x40xbf16>
    %c0_1 = arith.constant 0 : index
    %c0_2 = arith.constant 0 : index
    %2 = vector.load %arg2[%c0_1, %c0_2] : memref<40x32xbf16, #tpu.memory_space<vmem>>, vector<40x32xbf16>
    %cst = arith.constant dense<0.000000e+00> : vector<64x32xf32>
    %3 = tpu.matmul %1, %2, %cst {dimension_numbers = #tpu.dot_dimension_numbers<[1], [0], [0], [1], [0, 0, 1, 1], [], []>} : vector<64x40xbf16>, vector<40x32xbf16>, vector<64x32xf32> -> vector<64x32xf32>
    %c0_3 = arith.constant 0 : index
    %c0_4 = arith.constant 0 : index
    %4 = vector.load %arg3[%c0_3, %c0_4] : memref<1x32xf32, #tpu.memory_space<vmem>>, vector<1x32xf32>
    %5 = vector.broadcast %4 : vector<1x32xf32> to vector<64x32xf32>
    %6 = arith.addf %3, %5 : vector<64x32xf32>
    %cst_5 = arith.constant 0.000000e+00 : f32
    %7 = vector.broadcast %cst_5 : f32 to vector<64x32xf32>
    %8 = arith.maximumf %6, %7 : vector<64x32xf32>
    %9 = arith.truncf %8 : vector<64x32xf32> to vector<64x32xbf16>
    %c0_6 = arith.constant 0 : index
    %c0_7 = arith.constant 0 : index
    %10 = vector.load %arg4[%c0_6, %c0_7] : memref<32x32xbf16, #tpu.memory_space<vmem>>, vector<32x32xbf16>
    %cst_8 = arith.constant dense<0.000000e+00> : vector<64x32xf32>
    %11 = tpu.matmul %9, %10, %cst_8 {dimension_numbers = #tpu.dot_dimension_numbers<[1], [0], [0], [1], [0, 0, 1, 1], [], []>} : vector<64x32xbf16>, vector<32x32xbf16>, vector<64x32xf32> -> vector<64x32xf32>
    %c0_9 = arith.constant 0 : index
    %c0_10 = arith.constant 0 : index
    %12 = vector.load %arg5[%c0_9, %c0_10] : memref<1x32xf32, #tpu.memory_space<vmem>>, vector<1x32xf32>
    %13 = vector.broadcast %12 : vector<1x32xf32> to vector<64x32xf32>
    %14 = arith.addf %11, %13 : vector<64x32xf32>
    %cst_11 = arith.constant 0.000000e+00 : f32
    %15 = vector.broadcast %cst_11 : f32 to vector<64x32xf32>
    %16 = arith.maximumf %14, %15 : vector<64x32xf32>
    %c0_12 = arith.constant 0 : index
    %c0_13 = arith.constant 0 : index
    %17 = vector.load %arg6[%c0_12, %c0_13] : memref<64x32xf32, #tpu.memory_space<vmem>>, vector<64x32xf32>
    tpu.vector_store %arg6[%c0_12, %c0_13], %16 {strides = array<i32>} : memref<64x32xf32, #tpu.memory_space<vmem>>, vector<64x32xf32>,
    return
  }
  func.func @transform_0(%arg0: i32) -> (i32, i32) {
    %c0_i32 = arith.constant 0 : i32
    %c0_i32_0 = arith.constant 0 : i32
    return %arg0, %c0_i32 : i32, i32
  }
  func.func @transform_1(%arg0: i32) -> (i32, i32) {
    %c0_i32 = arith.constant 0 : i32
    %c0_i32_0 = arith.constant 0 : i32
    %c0_i32_1 = arith.constant 0 : i32
    return %c0_i32, %c0_i32_0 : i32, i32
  }
  func.func @transform_2(%arg0: i32) -> (i32, i32) {
    %c0_i32 = arith.constant 0 : i32
    %c0_i32_0 = arith.constant 0 : i32
    %c0_i32_1 = arith.constant 0 : i32
    return %c0_i32, %c0_i32_0 : i32, i32
  }
  func.func @transform_3(%arg0: i32) -> (i32, i32) {
    %c0_i32 = arith.constant 0 : i32
    %c0_i32_0 = arith.constant 0 : i32
    %c0_i32_1 = arith.constant 0 : i32
    return %c0_i32, %c0_i32_0 : i32, i32
  }
  func.func @transform_4(%arg0: i32) -> (i32, i32) {
    %c0_i32 = arith.constant 0 : i32
    %c0_i32_0 = arith.constant 0 : i32
    %c0_i32_1 = arith.constant 0 : i32
    return %c0_i32, %c0_i32_0 : i32, i32
  }
  func.func @transform_5(%arg0: i32) -> (i32, i32) {
    %c0_i32 = arith.constant 0 : i32
    %c0_i32_0 = arith.constant 0 : i32
    return %arg0, %c0_i32 : i32, i32
  }
}

</mosaic_0001>

<llo_original>
// kernel: tpu_custom_call.1
$region0: #{tpu_custom_call.1}
  #allocation0 [shape = 'u32[]', space=smem, size = 0x4, offset = 0x4, fixed_abs, tag = 'smem constant byte address 0x4 - core index']
  #allocation1 [shape = 'u32[144,128]{1,0:T(1,128)}', space=vmem, size = 0x12000, scoped, tag = 'internal scratch']
  %s0 = inlined_call_operand.vmem [shape: f32[200,40], index: 0, kind: input, shape index: {}]
  %s1 = inlined_call_operand.vmem [shape: bf16[40,32], index: 1, kind: input, shape index: {}]
  %s2 = inlined_call_operand.vmem [shape: f32[1,32], index: 2, kind: input, shape index: {}]
  %s3 = inlined_call_operand.vmem [shape: bf16[32,32], index: 3, kind: input, shape index: {}]
  %s4 = inlined_call_operand.vmem [shape: f32[1,32], index: 4, kind: input, shape index: {}]
  %s5 = inlined_call_operand.vmem [shape: f32[200,32], index: 5, kind: output, shape index: {}]
  %s6 = sld [smem:[#allocation0]]
  $region101: #{tpu_custom_call.1} parent=0
    _
  %s8 = ssub.s32 1, %s6
  %s9 = scalar_select 0, %s8, %s6
  $region1: #{tpu_custom_call.1} parent=0
    #allocation2 [shape = 'u8[65536]{0}', space=vmem, size = 0x10000, scoped, tag = 'output window, operand 0']
    loop: start=0, step=1, limit=6
    $region2: #{tpu_custom_call.1} parent=1 // loop_pre_header
      _
    $region3: #{tpu_custom_call.1} parent=1 // loop_header
      %s11 = sphi 0, %s15
      %p12 = scmp.ge.s32.totalorder %s11, 6
      %s21 = sphi 0, %s23
      %s24 = sphi 0, %s21
      %s25 = sphi 0, %s24
      %s41 = sphi 0, %s25
      %s45 = sphi 0, %s45
      %s47 = sphi 0, %s45
      %s48 = sphi 0, %s47
      %s62 = sphi 0, %s48
      %s66 = sphi 0, %s66
      %s68 = sphi 0, %s66
      %s69 = sphi 0, %s68
      %s83 = sphi 0, %s69
      %s87 = sphi 0, %s87
      %s89 = sphi 0, %s87
      %s90 = sphi 0, %s89
      %s104 = sphi 0, %s90
      %s108 = sphi 0, %s108
      %s110 = sphi 0, %s108
      %s111 = sphi 0, %s110
      %s125 = sphi 0, %s111
      %s131 = sphi 0, %s133
      %s134 = sphi 0, %s131
      %s135 = sphi 0, %s134
      %s151 = sphi 0, %s135
    $region4: #{tpu_custom_call.1} parent=1 // loop_header_branch
      %14 = sbr.rel (%p12) target = $region8
    $region5: #{tpu_custom_call.1} parent=1 // loop_body
      %s16 = ssub.s32 %s11, 1
      %s17 = ssub.s32 %s11, 2
      %s18 = sadd.s32 %s11, 1
      %s19 = ssub.s32 %s11, %s18
      %p20 = scmp.eq.s32.totalorder %s19, 0
      %s22 = sadd.s32 %s21, 1
      %s23 = scalar_select %p20, %s21, %s22
      %p26 = pneg %p20
      %p27 = scmp.eq.s32.totalorder %s11, 3
      %p28 = por %p26, %p27
      %p29 = scmp.ne.s32.totalorder %s21, %s24
      %p30 = scmp.eq.s32.totalorder %s11, 0
      %p31 = por %p29, %p30
      %p32 = scmp.ne.s32.totalorder %s21, %s24
      %p33 = scmp.eq.s32.totalorder %s16, 3
      %p34 = por %p32, %p33
      %p35 = scmp.ne.s32.totalorder %s24, %s25
      %p36 = scmp.eq.s32.totalorder %s16, 0
      %p37 = por %p35, %p36
      %p38 = scmp.ne.s32.totalorder %s24, %s25
      %p39 = scmp.eq.s32.totalorder %s17, 3
      %p40 = por %p38, %p39
      %p42 = scmp.ne.s32.totalorder %s25, %s41
      %p43 = scmp.eq.s32.totalorder %s17, 0
      %p44 = por %p42, %p43
      %s46 = sadd.s32 %s45, 1
      %p49 = scmp.eq.s32.totalorder %s11, 3
      %p50 = scmp.ne.s32.totalorder %s45, %s47
      %p51 = scmp.eq.s32.totalorder %s11, 0
      %p52 = por %p50, %p51
      %p53 = scmp.ne.s32.totalorder %s45, %s47
      %p54 = scmp.eq.s32.totalorder %s16, 3
      %p55 = por %p53, %p54
      %p56 = scmp.ne.s32.totalorder %s47, %s48
      %p57 = scmp.eq.s32.totalorder %s16, 0
      %p58 = por %p56, %p57
      %p59 = scmp.ne.s32.totalorder %s47, %s48
      %p60 = scmp.eq.s32.totalorder %s17, 3
      %p61 = por %p59, %p60
      %p63 = scmp.ne.s32.totalorder %s48, %s62
      %p64 = scmp.eq.s32.totalorder %s17, 0
      %p65 = por %p63, %p64
      %s67 = sadd.s32 %s66, 1
      %p70 = scmp.eq.s32.totalorder %s11, 3
      %p71 = scmp.ne.s32.totalorder %s66, %s68
      %p72 = scmp.eq.s32.totalorder %s11, 0
      %p73 = por %p71, %p72
      %p74 = scmp.ne.s32.totalorder %s66, %s68
      %p75 = scmp.eq.s32.totalorder %s16, 3
      %p76 = por %p74, %p75
      %p77 = scmp.ne.s32.totalorder %s68, %s69
      %p78 = scmp.eq.s32.totalorder %s16, 0
      %p79 = por %p77, %p78
      %p80 = scmp.ne.s32.totalorder %s68, %s69
      %p81 = scmp.eq.s32.totalorder %s17, 3
      %p82 = por %p80, %p81
      %p84 = scmp.ne.s32.totalorder %s69, %s83
      %p85 = scmp.eq.s32.totalorder %s17, 0
      %p86 = por %p84, %p85
      %s88 = sadd.s32 %s87, 1
      %p91 = scmp.eq.s32.totalorder %s11, 3
      %p92 = scmp.ne.s32.totalorder %s87, %s89
      %p93 = scmp.eq.s32.totalorder %s11, 0
      %p94 = por %p92, %p93
      %p95 = scmp.ne.s32.totalorder %s87, %s89
      %p96 = scmp.eq.s32.totalorder %s16, 3
      %p97 = por %p95, %p96
      %p98 = scmp.ne.s32.totalorder %s89, %s90
      %p99 = scmp.eq.s32.totalorder %s16, 0
      %p100 = por %p98, %p99
      %p101 = scmp.ne.s32.totalorder %s89, %s90
      %p102 = scmp.eq.s32.totalorder %s17, 3
      %p103 = por %p101, %p102
      %p105 = scmp.ne.s32.totalorder %s90, %s104
      %p106 = scmp.eq.s32.totalorder %s17, 0
      %p107 = por %p105, %p106
      %s109 = sadd.s32 %s108, 1
      %p112 = scmp.eq.s32.totalorder %s11, 3
      %p113 = scmp.ne.s32.totalorder %s108, %s110
      %p114 = scmp.eq.s32.totalorder %s11, 0
      %p115 = por %p113, %p114
      %p116 = scmp.ne.s32.totalorder %s108, %s110
      %p117 = scmp.eq.s32.totalorder %s16, 3
      %p118 = por %p116, %p117
      %p119 = scmp.ne.s32.totalorder %s110, %s111
      %p120 = scmp.eq.s32.totalorder %s16, 0
      %p121 = por %p119, %p120
      %p122 = scmp.ne.s32.totalorder %s110, %s111
      %p123 = scmp.eq.s32.totalorder %s17, 3
      %p124 = por %p122, %p123
      %p126 = scmp.ne.s32.totalorder %s111, %s125
      %p127 = scmp.eq.s32.totalorder %s17, 0
      %p128 = por %p126, %p127
      %s129 = ssub.s32 %s11, %s18
      %p130 = scmp.eq.s32.totalorder %s129, 0
      %s132 = sadd.s32 %s131, 1
      %s133 = scalar_select %p130, %s131, %s132
      %p136 = pneg %p130
      %p137 = scmp.eq.s32.totalorder %s11, 3
      %p138 = por %p136, %p137
      %p139 = scmp.ne.s32.totalorder %s131, %s134
      %p140 = scmp.eq.s32.totalorder %s11, 0
      %p141 = por %p139, %p140
      %p142 = scmp.ne.s32.totalorder %s131, %s134
      %p143 = scmp.eq.s32.totalorder %s16, 3
      %p144 = por %p142, %p143
      %p145 = scmp.ne.s32.totalorder %s134, %s135
      %p146 = scmp.eq.s32.totalorder %s16, 0
      %p147 = por %p145, %p146
      %p148 = scmp.ne.s32.totalorder %s134, %s135
      %p149 = scmp.eq.s32.totalorder %s17, 3
      %p150 = por %p148, %p149
      %p152 = scmp.ne.s32.totalorder %s135, %s151
      %p153 = scmp.eq.s32.totalorder %s17, 0
      %p154 = por %p152, %p153
      %p155 = scmp.le.s32.totalorder 1, %s11
      %p156 = scmp.lt.s32.totalorder %s11, 5
      %p157 = pnand %p155, %p156
      %p158 = pneg %p157
      // Predicated region
      $region9: #{tpu_custom_call.1} parent=5 // pred_check
        _
      $region10: #{tpu_custom_call.1} parent=5 // pred_check_branch
        %160 = sbr.rel (%p157) target = $region12
      $region11: #{tpu_custom_call.1} parent=5 // pred_region
        %s161 = ssub.s32 %s11, 1
        // Predicated region
        $region13: #{tpu_custom_call.1} parent=11 // pred_check
          %p162 = pneg %p58
        $region14: #{tpu_custom_call.1} parent=11 // pred_check_branch
          %164 = sbr.rel (%p162) target = $region16
        $region15: #{tpu_custom_call.1} parent=11 // pred_region
          _
        $region16: #{tpu_custom_call.1} parent=11 // pred_fallthru
          _
        // Predicated region
        $region17: #{tpu_custom_call.1} parent=11 // pred_check
          %p165 = pneg %p79
        $region18: #{tpu_custom_call.1} parent=11 // pred_check_branch
          %167 = sbr.rel (%p165) target = $region20
        $region19: #{tpu_custom_call.1} parent=11 // pred_region
          _
        $region20: #{tpu_custom_call.1} parent=11 // pred_fallthru
          _
        // Predicated region
        $region21: #{tpu_custom_call.1} parent=11 // pred_check
          %p168 = pneg %p100
        $region22: #{tpu_custom_call.1} parent=11 // pred_check_branch
          %170 = sbr.rel (%p168) target = $region24
        $region23: #{tpu_custom_call.1} parent=11 // pred_region
          _
        $region24: #{tpu_custom_call.1} parent=11 // pred_fallthru
          _
        // Predicated region
        $region25: #{tpu_custom_call.1} parent=11 // pred_check
          %p171 = pneg %p121
        $region26: #{tpu_custom_call.1} parent=11 // pred_check_branch
          %173 = sbr.rel (%p171) target = $region28
        $region27: #{tpu_custom_call.1} parent=11 // pred_region
          _
        $region28: #{tpu_custom_call.1} parent=11 // pred_fallthru
          _
      $region12: #{tpu_custom_call.1} parent=5 // pred_fallthru
        _
      %p174 = scmp.lt.s32.totalorder %s11, 4
      // Predicated region
      $region29: #{tpu_custom_call.1} parent=5 // pred_check
        %p175 = pneg %p174
      $region30: #{tpu_custom_call.1} parent=5 // pred_check_branch
        %177 = sbr.rel (%p175) target = $region32
      $region31: #{tpu_custom_call.1} parent=5 // pred_region
        // Predicated region
        $region33: #{tpu_custom_call.1} parent=31 // pred_check
          %p178 = pneg %p31
        $region34: #{tpu_custom_call.1} parent=31 // pred_check_branch
          %180 = sbr.rel (%p178) target = $region36
        $region35: #{tpu_custom_call.1} parent=31 // pred_region
          %s181 = smul.u32 8, %s11
          %s182 = ssub.s32 25, %s181
          %p183 = scmp.lt.s32.totalorder %s182, 8
          %s184 = scalar_select %p183, %s182, 8
          %s185 = smul.u32 128, %s184
          %p186 = scmp.lt.s32.totalorder %s181, 24
          %s187 = scalar_select %p186, %s181, 24
          %s188 = smul.addr %s187, 8
          %s189 = scalar_lea.vmem %s0, %s188
          %s190 = smul.u32 8, %s11
          %s191 = ssub.s32 25, %s190
          %p192 = scmp.lt.s32.totalorder %s191, 8
          %s193 = scalar_select %p192, %s191, 8
          %s194 = smul.u32 128, %s193
        $region36: #{tpu_custom_call.1} parent=31 // pred_fallthru
          _
      $region32: #{tpu_custom_call.1} parent=5 // pred_fallthru
        _
      %p195 = scmp.le.s32.totalorder 1, %s11
      %p196 = scmp.lt.s32.totalorder %s11, 5
      %p197 = pnand %p195, %p196
      %p198 = pneg %p197
      // Predicated region
      $region37: #{tpu_custom_call.1} parent=5 // pred_check
        _
      $region38: #{tpu_custom_call.1} parent=5 // pred_check_branch
        %200 = sbr.rel (%p197) target = $region40
      $region39: #{tpu_custom_call.1} parent=5 // pred_region
        %s201 = ssub.s32 %s11, 1
        %s202 = smul.u32 8, %s16
        %s203 = ssub.s32 25, %s202
        %p204 = scmp.lt.s32.totalorder %s203, 8
        %s205 = scalar_select %p204, %s203, 8
        %s206 = smul.u32 128, %s205
        %p207 = scmp.lt.s32.totalorder %s202, 24
        %s208 = scalar_select %p207, %s202, 24
        %s209 = smul.addr %s208, 8
        %s210 = scalar_lea.vmem %s0, %s209
        %p211 = pneg %p37
        %p212 = pneg %p34
        %p213 = pneg %p58
        %p214 = pneg %p55
        %p215 = pneg %p79
        %p216 = pneg %p76
        %p217 = pneg %p100
        %p218 = pneg %p97
        %p219 = pneg %p121
        %p220 = pneg %p118
        %p221 = pneg %p147
        %p222 = pneg %p144
        %s223 = sand.u32 %s134, 1
        %s224 = sand.u32 %s134, 1
        %s225 = smul.addr %s224, 64
        %s226 = scalar_lea.vmem [#allocation2], %s225
        %s227 = smul.u32 8, %s16
        %s228 = ssub.s32 25, %s227
        %p229 = scmp.lt.s32.totalorder %s228, 8
        %s230 = scalar_select %p229, %s228, 8
        %s231 = smul.u32 128, %s230
        %p232 = scmp.lt.s32.totalorder %s227, 24
        %s233 = scalar_select %p232, %s227, 24
        %s234 = smul.addr %s233, 8
        %s235 = scalar_lea.vmem %s0, %s234
        %s236 = smul.u32 8, %s16
        %s237 = ssub.s32 25, %s236
        %p238 = scmp.lt.s32.totalorder %s237, 8
        %s239 = scalar_select %p238, %s237, 8
        %s240 = smul.u32 128, %s239
        %s241 = smul.u32 8, %s16
        %s242 = ssub.s32 25, %s241
        %p243 = scmp.lt.s32.totalorder %s242, 8
        %s244 = scalar_select %p243, %s242, 8
        %s245 = smul.u32 128, %s244
        %v247 = vld [vmem:[%s235] sm:$0xff]
        %v248 = vld [vmem:[%s235 + $0x8] sm:$0xff]
        %v249 = vld [vmem:[%s235 + $0x10] sm:$0xff]
        %v250 = vld [vmem:[%s235 + $0x18] sm:$0xff]
        %v251 = vld [vmem:[%s235 + $0x20] sm:$0xff]
        %v252 = vld [vmem:[%s235 + $0x28] sm:$0xff]
        %v253 = vld [vmem:[%s235 + $0x30] sm:$0xff]
        %v254 = vld [vmem:[%s235 + $0x38] sm:$0xff]
        %v255 = vpack.c.bf16 %v248, %v247
        %v256 = vpack.c.bf16 %v250, %v249
        %v257 = vpack.c.bf16 %v252, %v251
        %v258 = vpack.c.bf16 %v254, %v253
        %v259 = vld [vmem:[%s1] sm:$0xf]
        %v260 = vld [vmem:[%s1 + $0x4] sm:$0xf]
        %v261 = vld [vmem:[%s1 + $0x8] sm:$0xf]
        %v262 = vld [vmem:[%s1 + $0xc] sm:$0xf]
        %v263 = vld [vmem:[%s1 + $0x10] sm:$0xf]
        %v264 = vld [vmem:[%s2] sm:$0x1]
        %v266 = vlaneseq
        %v267 = vshrl.u32 %v266, 7
        %v268 = vsub.s32 0, %v267
        %v269 = vrot.slane %v264, %v268
        %v276 = vunpack.c.l.b16 %v259
        %v277 = vunpack.c.l.b16 %v260
        %v278 = vunpack.c.l.b16 %v261
        %v279 = vunpack.c.l.b16 %v262
        %v280 = vunpack.c.l.b16 %v263
        %v281 = vpack.c.b16 %v277, %v276
        %v282 = vpack.c.b16 %v279, %v278
        %v283 = vpack.c.b16 %v280, %v280
        %vm286 = vcmask 326656
        %v288 = vsel %vm286, %v255, 0
        %v291 = vsel %vm286, %v256, 0
        %v294 = vsel %vm286, %v257, 0
        %v297 = vsel %vm286, %v258, 0
        %vm299 = vcmask 1043456
        %v301 = vsel %vm299, %v283, 0
        %303 = vmatprep.subr.bf16.mxu0 0
        %304 = vmatpush1.bf16.msra.mxu0 0
        %305 = vmatprep.subr.bf16.mxu0 0
        %306 = vmatpush1.bf16.msra.mxu0 0
        %307 = vmatprep.subr.bf16.mxu0 0
        %308 = vmatpush1.bf16.msra.mxu0 0
        %309 = vmatprep.subr.bf16.mxu0 0
        %310 = vmatpush1.bf16.msra.mxu0 0
        %311 = vmatprep.subr.bf16.mxu0 0
        %312 = vmatpush1.bf16.msra.mxu0 0
        %313 = vmatprep.subr.bf16.mxu0 0
        %314 = vmatpush1.bf16.msra.mxu0 %v301
        %315 = vmatprep.subr.bf16.mxu0 0
        %316 = vmatpush1.bf16.msra.mxu0 %v282
        %317 = vmatprep.subr.bf16.mxu0 0
        %318 = vmatpush1.bf16.msra.mxu0 %v281
        %319 = vmatprep.subr.bf16.mxu0 0
        %320 = vmatpush2.bf16.msra.mxu0 0
        %321 = vmatprep.subr.bf16.mxu0 0
        %322 = vmatpush2.bf16.msra.mxu0 0
        %323 = vmatprep.subr.bf16.mxu0 0
        %324 = vmatpush2.bf16.msra.mxu0 0
        %325 = vmatprep.subr.bf16.mxu0 0
        %326 = vmatpush2.bf16.msra.mxu0 0
        %327 = vmatprep.subr.bf16.mxu0 0
        %328 = vmatpush2.bf16.msra.mxu0 0
        %329 = vmatprep.subr.bf16.mxu0 0
        %330 = vmatpush2.bf16.msra.mxu0 0
        %331 = vmatprep.subr.bf16.mxu0 0
        %332 = vmatpush2.bf16.msra.mxu0 0
        %333 = vmatprep.subr.bf16.mxu0 0
        %334 = vmatpush2.bf16.msra.mxu0 0
        %335 = vmatprep.mubr.bf16.mxu0 0
        %336 = vmatmul.mubr.bf16.gmra.mxu0 %v288
        %v337 = vpop.f32.mrf.mxu0
        %v338 = vadd.f32 %v269, %v337
        %v339 = vpop.f32.mrf.mxu0
        %v340 = vpop.f32.mrf.mxu0
        %v341 = vadd.f32 %v269, %v340
        %v342 = vpop.f32.mrf.mxu0
        %343 = vmatprep.mubr.bf16.mxu0 0
        %344 = vmatmul.mubr.bf16.gmra.mxu0 %v291
        %v345 = vpop.f32.mrf.mxu0
        %v346 = vadd.f32 %v269, %v345
        %v347 = vpop.f32.mrf.mxu0
        %v348 = vpop.f32.mrf.mxu0
        %v349 = vadd.f32 %v269, %v348
        %v350 = vpop.f32.mrf.mxu0
        %351 = vmatprep.mubr.bf16.mxu0 0
        %352 = vmatmul.mubr.bf16.gmra.mxu0 %v294
        %v353 = vpop.f32.mrf.mxu0
        %v354 = vadd.f32 %v269, %v353
        %v355 = vpop.f32.mrf.mxu0
        %v356 = vpop.f32.mrf.mxu0
        %v357 = vadd.f32 %v269, %v356
        %v358 = vpop.f32.mrf.mxu0
        %359 = vmatprep.mubr.bf16.mxu0 0
        %360 = vmatmul.mubr.bf16.gmra.mxu0 %v297
        %v361 = vpop.f32.mrf.mxu0
        %v362 = vadd.f32 %v269, %v361
        %v363 = vpop.f32.mrf.mxu0
        %v364 = vpop.f32.mrf.mxu0
        %v365 = vadd.f32 %v269, %v364
        %v366 = vpop.f32.mrf.mxu0
        %367 = vdwg.mxu0
        %v368 = vmax.f32 %v338, 0.0
        %v369 = vmax.f32 %v341, 0.0
        %v370 = vmax.f32 %v346, 0.0
        %v371 = vmax.f32 %v349, 0.0
        %v372 = vmax.f32 %v354, 0.0
        %v373 = vmax.f32 %v357, 0.0
        %v374 = vmax.f32 %v362, 0.0
        %v375 = vmax.f32 %v365, 0.0
        %v376 = vpack.c.bf16 %v369, %v368
        %v377 = vpack.c.bf16 %v371, %v370
        %v378 = vpack.c.bf16 %v373, %v372
        %v379 = vpack.c.bf16 %v375, %v374
        %v380 = vld [vmem:[%s3] sm:$0xf]
        %v381 = vld [vmem:[%s3 + $0x4] sm:$0xf]
        %v382 = vld [vmem:[%s3 + $0x8] sm:$0xf]
        %v383 = vld [vmem:[%s3 + $0xc] sm:$0xf]
        %v384 = vld [vmem:[%s4] sm:$0x1]
        %v386 = vlaneseq
        %v387 = vshrl.u32 %v386, 7
        %v388 = vsub.s32 0, %v387
        %v389 = vrot.slane %v384, %v388
        %v395 = vunpack.c.l.b16 %v380
        %v396 = vunpack.c.l.b16 %v381
        %v397 = vunpack.c.l.b16 %v382
        %v398 = vunpack.c.l.b16 %v383
        %v399 = vpack.c.b16 %v396, %v395
        %v400 = vpack.c.b16 %v398, %v397
        %vm403 = vcmask 261120
        %v405 = vsel %vm403, %v376, 0
        %v408 = vsel %vm403, %v377, 0
        %v411 = vsel %vm403, %v378, 0
        %v414 = vsel %vm403, %v379, 0
        %416 = vmatprep.subr.bf16.mxu0 0
        %417 = vmatpush1.bf16.msra.mxu0 0
        %418 = vmatprep.subr.bf16.mxu0 0
        %419 = vmatpush1.bf16.msra.mxu0 0
        %420 = vmatprep.subr.bf16.mxu0 0
        %421 = vmatpush1.bf16.msra.mxu0 0
        %422 = vmatprep.subr.bf16.mxu0 0
        %423 = vmatpush1.bf16.msra.mxu0 0
        %424 = vmatprep.subr.bf16.mxu0 0
        %425 = vmatpush1.bf16.msra.mxu0 0
        %426 = vmatprep.subr.bf16.mxu0 0
        %427 = vmatpush1.bf16.msra.mxu0 0
        %428 = vmatprep.subr.bf16.mxu0 0
        %429 = vmatpush1.bf16.msra.mxu0 %v400
        %430 = vmatprep.subr.bf16.mxu0 0
        %431 = vmatpush1.bf16.msra.mxu0 %v399
        %432 = vmatprep.subr.bf16.mxu0 0
        %433 = vmatpush2.bf16.msra.mxu0 0
        %434 = vmatprep.subr.bf16.mxu0 0
        %435 = vmatpush2.bf16.msra.mxu0 0
        %436 = vmatprep.subr.bf16.mxu0 0
        %437 = vmatpush2.bf16.msra.mxu0 0
        %438 = vmatprep.subr.bf16.mxu0 0
        %439 = vmatpush2.bf16.msra.mxu0 0
        %440 = vmatprep.subr.bf16.mxu0 0
        %441 = vmatpush2.bf16.msra.mxu0 0
        %442 = vmatprep.subr.bf16.mxu0 0
        %443 = vmatpush2.bf16.msra.mxu0 0
        %444 = vmatprep.subr.bf16.mxu0 0
        %445 = vmatpush2.bf16.msra.mxu0 0
        %446 = vmatprep.subr.bf16.mxu0 0
        %447 = vmatpush2.bf16.msra.mxu0 0
        %448 = vmatprep.mubr.bf16.mxu0 0
        %449 = vmatmul.mubr.bf16.gmra.mxu0 %v405
        %v450 = vpop.f32.mrf.mxu0
        %v451 = vadd.f32 %v389, %v450
        %v452 = vpop.f32.mrf.mxu0
        %v453 = vpop.f32.mrf.mxu0
        %v454 = vadd.f32 %v389, %v453
        %v455 = vpop.f32.mrf.mxu0
        %456 = vmatprep.mubr.bf16.mxu0 0
        %457 = vmatmul.mubr.bf16.gmra.mxu0 %v408
        %v458 = vpop.f32.mrf.mxu0
        %v459 = vadd.f32 %v389, %v458
        %v460 = vpop.f32.mrf.mxu0
        %v461 = vpop.f32.mrf.mxu0
        %v462 = vadd.f32 %v389, %v461
        %v463 = vpop.f32.mrf.mxu0
        %464 = vmatprep.mubr.bf16.mxu0 0
        %465 = vmatmul.mubr.bf16.gmra.mxu0 %v411
        %v466 = vpop.f32.mrf.mxu0
        %v467 = vadd.f32 %v389, %v466
        %v468 = vpop.f32.mrf.mxu0
        %v469 = vpop.f32.mrf.mxu0
        %v470 = vadd.f32 %v389, %v469
        %v471 = vpop.f32.mrf.mxu0
        %472 = vmatprep.mubr.bf16.mxu0 0
        %473 = vmatmul.mubr.bf16.gmra.mxu0 %v414
        %v474 = vpop.f32.mrf.mxu0
        %v475 = vadd.f32 %v389, %v474
        %v476 = vpop.f32.mrf.mxu0
        %v477 = vpop.f32.mrf.mxu0
        %v478 = vadd.f32 %v389, %v477
        %v479 = vpop.f32.mrf.mxu0
        %480 = vdwg.mxu0
        %v481 = vmax.f32 %v451, 0.0
        %v482 = vmax.f32 %v454, 0.0
        %v483 = vmax.f32 %v459, 0.0
        %v484 = vmax.f32 %v462, 0.0
        %v485 = vmax.f32 %v467, 0.0
        %v486 = vmax.f32 %v470, 0.0
        %v487 = vmax.f32 %v475, 0.0
        %v488 = vmax.f32 %v478, 0.0
        %489 = vst.msk [vmem:[%s226] sm:$0xff] %vm403, %v481
        %490 = vst.msk [vmem:[%s226 + $0x8] sm:$0xff] %vm403, %v482
        %491 = vst.msk [vmem:[%s226 + $0x10] sm:$0xff] %vm403, %v483
        %492 = vst.msk [vmem:[%s226 + $0x18] sm:$0xff] %vm403, %v484
        %493 = vst.msk [vmem:[%s226 + $0x20] sm:$0xff] %vm403, %v485
        %494 = vst.msk [vmem:[%s226 + $0x28] sm:$0xff] %vm403, %v486
        %495 = vst.msk [vmem:[%s226 + $0x30] sm:$0xff] %vm403, %v487
        %496 = vst.msk [vmem:[%s226 + $0x38] sm:$0xff] %vm403, %v488
        %s497 = sand.u32 %s134, 1
        %s498 = sand.u32 %s134, 1
        %s499 = smul.addr %s498, 64
        %s500 = scalar_lea.vmem [#allocation2], %s499
        // Predicated region
        $region41: #{tpu_custom_call.1} parent=39 // pred_check
          %p501 = pneg %p144
        $region42: #{tpu_custom_call.1} parent=39 // pred_check_branch
          %503 = sbr.rel (%p501) target = $region44
        $region43: #{tpu_custom_call.1} parent=39 // pred_region
          %s504 = smul.u32 8, %s16
          %s505 = ssub.s32 25, %s504
          %p506 = scmp.lt.s32.totalorder %s505, 8
          %s507 = scalar_select %p506, %s505, 8
          %s508 = smul.u32 128, %s507
          %p509 = scmp.ne.s32.totalorder 0, %s508
          %s510 = smul.addr %s504, 8
          %s511 = scalar_lea.vmem %s5, %s510
          // Predicated region
          $region45: #{tpu_custom_call.1} parent=43 // pred_check
            %p512 = pneg %p509
          $region46: #{tpu_custom_call.1} parent=43 // pred_check_branch
            %514 = sbr.rel (%p512) target = $region48
          $region47: #{tpu_custom_call.1} parent=43 // pred_region
            // Predicated region
            $region49: #{tpu_custom_call.1} parent=47 // pred_check
              _
            $region50: #{tpu_custom_call.1} parent=47 // pred_check_branch
              %516 = sbr.rel (0) target = $region52
            $region51: #{tpu_custom_call.1} parent=47 // pred_region
              // Predicated region
              $region71: #{tpu_custom_call.1} parent=51 // pred_check
                _
              $region72: #{tpu_custom_call.1} parent=51 // pred_check_branch
                %580 = sbr.rel (0) target = $region74
              $region73: #{tpu_custom_call.1} parent=51 // pred_region
                %s581 = sshrl.u32 %s507, 3
                // While loop
                $region75: #{tpu_custom_call.1} parent=73 // loop_pre_header
                  _
                $region76: #{tpu_custom_call.1} parent=73 // loop_header
                  %s583 = sphi 0, %s585
                  %p584 = scmp.ge.s32.totalorder %s583, %s581
                  %s588 = sphi 0, %s609
                  %s589 = sphi %s500, %s612
                  %s590 = sphi %s511, %s613
                $region77: #{tpu_custom_call.1} parent=73 // loop_header_branch
                  %587 = sbr.rel (%p584) target = $region81
                $region78: #{tpu_custom_call.1} parent=73 // loop_body
                  %v591 = vld [vmem:[%s589] sm:$0xff]
                  %592 = vst [vmem:[%s590] sm:$0xff] %v591
                  %v593 = vld [vmem:[%s589 + $0x8] sm:$0xff]
                  %594 = vst [vmem:[%s590 + $0x8] sm:$0xff] %v593
                  %v595 = vld [vmem:[%s589 + $0x10] sm:$0xff]
                  %596 = vst [vmem:[%s590 + $0x10] sm:$0xff] %v595
                  %v597 = vld [vmem:[%s589 + $0x18] sm:$0xff]
                  %598 = vst [vmem:[%s590 + $0x18] sm:$0xff] %v597
                  %v599 = vld [vmem:[%s589 + $0x20] sm:$0xff]
                  %600 = vst [vmem:[%s590 + $0x20] sm:$0xff] %v599
                  %v601 = vld [vmem:[%s589 + $0x28] sm:$0xff]
                  %602 = vst [vmem:[%s590 + $0x28] sm:$0xff] %v601
                  %v603 = vld [vmem:[%s589 + $0x30] sm:$0xff]
                  %604 = vst [vmem:[%s590 + $0x30] sm:$0xff] %v603
                  %v605 = vld [vmem:[%s589 + $0x38] sm:$0xff]
                  %606 = vst [vmem:[%s590 + $0x38] sm:$0xff] %v605
                  %s607 = sadd.s32 1, %s588
                  %p608 = scmp.ge.s32.totalorder %s607, %s581
                  %s609 = scalar_select %p608, 0, %s607
                  %s610 = smul.u32 %s609, 64
                  %s611 = smul.u32 %s609, 64
                  %s612 = scalar_lea.vmem %s500, %s610 [#allocation2]
                  %s613 = scalar_lea.vmem %s511, %s611
                $region79: #{tpu_custom_call.1} parent=73 // loop_footer
                  %s585 = sadd.s32 %s583, 1
                $region80: #{tpu_custom_call.1} parent=73 // loop_footer_branch
                  %582 = sbr.rel target = $region76
                $region81: #{tpu_custom_call.1} parent=73 // loop_exit
                  _
                %s614 = sshrl.u32 %s507, 3
                %s615 = sand.u32 %s507, 7
                %s616 = smul.u32 %s614, 8
                %s617 = smul.u32 8, %s616
                %s618 = scalar_lea.vmem %s500, %s617 [#allocation2]
                %s619 = smul.u32 8, %s616
                %s620 = scalar_lea.vmem %s511, %s619
                // While loop
                $region82: #{tpu_custom_call.1} parent=73 // loop_pre_header
                  _
                $region83: #{tpu_custom_call.1} parent=73 // loop_header
                  %s622 = sphi 0, %s624
                  %p623 = scmp.ge.s32.totalorder %s622, %s615
                  %s627 = sphi 0, %s634
                  %s628 = sphi %s618, %s637
                  %s629 = sphi %s620, %s638
                $region84: #{tpu_custom_call.1} parent=73 // loop_header_branch
                  %626 = sbr.rel (%p623) target = $region88
                $region85: #{tpu_custom_call.1} parent=73 // loop_body
                  %v630 = vld [vmem:[%s628] sm:$0xff]
                  %631 = vst [vmem:[%s629] sm:$0xff] %v630
                  %s632 = sadd.s32 1, %s627
                  %p633 = scmp.ge.s32.totalorder %s632, %s615
                  %s634 = scalar_select %p633, 0, %s632
                  %s635 = smul.u32 %s634, 8
                  %s636 = smul.u32 %s634, 8
                  %s637 = scalar_lea.vmem %s618, %s635 [#allocation2]
                  %s638 = scalar_lea.vmem %s620, %s636
                $region86: #{tpu_custom_call.1} parent=73 // loop_footer
                  %s624 = sadd.s32 %s622, 1
                $region87: #{tpu_custom_call.1} parent=73 // loop_footer_branch
                  %621 = sbr.rel target = $region83
                $region88: #{tpu_custom_call.1} parent=73 // loop_exit
                  _
              $region74: #{tpu_custom_call.1} parent=51 // pred_fallthru
                _
              // Predicated region
              $region89: #{tpu_custom_call.1} parent=51 // pred_check
                _
              $region90: #{tpu_custom_call.1} parent=51 // pred_check_branch
                %640 = sbr.rel target = $region92
              $region91: #{tpu_custom_call.1} parent=51 // pred_region
                _
              $region92: #{tpu_custom_call.1} parent=51 // pred_fallthru
                _
            $region52: #{tpu_custom_call.1} parent=47 // pred_fallthru
              _
            // Predicated region
            $region53: #{tpu_custom_call.1} parent=47 // pred_check
              _
            $region54: #{tpu_custom_call.1} parent=47 // pred_check_branch
              %518 = sbr.rel target = $region56
            $region55: #{tpu_custom_call.1} parent=47 // pred_region
              %s520 = ssub.s32 256, 1
              %s521 = sshrl.u32 %s507, 3
              // While loop
              $region57: #{tpu_custom_call.1} parent=55 // loop_pre_header
                _
              $region58: #{tpu_custom_call.1} parent=55 // loop_header
                %s523 = sphi 0, %s525
                %p524 = scmp.ge.s32.totalorder %s523, %s521
                %s528 = sphi 0, %s549
                %s529 = sphi %s500, %s552
                %s530 = sphi %s511, %s553
              $region59: #{tpu_custom_call.1} parent=55 // loop_header_branch
                %527 = sbr.rel (%p524) target = $region63
              $region60: #{tpu_custom_call.1} parent=55 // loop_body
                %v531 = vld [vmem:[%s529] sm:%s520]
                %532 = vst [vmem:[%s530] sm:%s520] %v531
                %v533 = vld [vmem:[%s529 + $0x8] sm:%s520]
                %534 = vst [vmem:[%s530 + $0x8] sm:%s520] %v533
                %v535 = vld [vmem:[%s529 + $0x10] sm:%s520]
                %536 = vst [vmem:[%s530 + $0x10] sm:%s520] %v535
                %v537 = vld [vmem:[%s529 + $0x18] sm:%s520]
                %538 = vst [vmem:[%s530 + $0x18] sm:%s520] %v537
                %v539 = vld [vmem:[%s529 + $0x20] sm:%s520]
                %540 = vst [vmem:[%s530 + $0x20] sm:%s520] %v539
                %v541 = vld [vmem:[%s529 + $0x28] sm:%s520]
                %542 = vst [vmem:[%s530 + $0x28] sm:%s520] %v541
                %v543 = vld [vmem:[%s529 + $0x30] sm:%s520]
                %544 = vst [vmem:[%s530 + $0x30] sm:%s520] %v543
                %v545 = vld [vmem:[%s529 + $0x38] sm:%s520]
                %546 = vst [vmem:[%s530 + $0x38] sm:%s520] %v545
                %s547 = sadd.s32 1, %s528
                %p548 = scmp.ge.s32.totalorder %s547, %s521
                %s549 = scalar_select %p548, 0, %s547
                %s550 = smul.u32 %s549, 64
                %s551 = smul.u32 %s549, 64
                %s552 = scalar_lea.vmem %s500, %s550 [#allocation2]
                %s553 = scalar_lea.vmem %s511, %s551
              $region61: #{tpu_custom_call.1} parent=55 // loop_footer
                %s525 = sadd.s32 %s523, 1
              $region62: #{tpu_custom_call.1} parent=55 // loop_footer_branch
                %522 = sbr.rel target = $region58
              $region63: #{tpu_custom_call.1} parent=55 // loop_exit
                _
              %s554 = sshrl.u32 %s507, 3
              %s555 = sand.u32 %s507, 7
              %s556 = smul.u32 %s554, 8
              %s557 = smul.u32 8, %s556
              %s558 = scalar_lea.vmem %s500, %s557 [#allocation2]
              %s559 = smul.u32 8, %s556
              %s560 = scalar_lea.vmem %s511, %s559
              // While loop
              $region64: #{tpu_custom_call.1} parent=55 // loop_pre_header
                _
              $region65: #{tpu_custom_call.1} parent=55 // loop_header
                %s562 = sphi 0, %s564
                %p563 = scmp.ge.s32.totalorder %s562, %s555
                %s567 = sphi 0, %s574
                %s568 = sphi %s558, %s577
                %s569 = sphi %s560, %s578
              $region66: #{tpu_custom_call.1} parent=55 // loop_header_branch
                %566 = sbr.rel (%p563) target = $region70
              $region67: #{tpu_custom_call.1} parent=55 // loop_body
                %v570 = vld [vmem:[%s568] sm:%s520]
                %571 = vst [vmem:[%s569] sm:%s520] %v570
                %s572 = sadd.s32 1, %s567
                %p573 = scmp.ge.s32.totalorder %s572, %s555
                %s574 = scalar_select %p573, 0, %s572
                %s575 = smul.u32 %s574, 8
                %s576 = smul.u32 %s574, 8
                %s577 = scalar_lea.vmem %s558, %s575 [#allocation2]
                %s578 = scalar_lea.vmem %s560, %s576
              $region68: #{tpu_custom_call.1} parent=55 // loop_footer
                %s564 = sadd.s32 %s562, 1
              $region69: #{tpu_custom_call.1} parent=55 // loop_footer_branch
                %561 = sbr.rel target = $region65
              $region70: #{tpu_custom_call.1} parent=55 // loop_exit
                _
            $region56: #{tpu_custom_call.1} parent=47 // pred_fallthru
              _
          $region48: #{tpu_custom_call.1} parent=43 // pred_fallthru
            _
          %641 = vnop
        $region44: #{tpu_custom_call.1} parent=39 // pred_fallthru
          _
      $region40: #{tpu_custom_call.1} parent=5 // pred_fallthru
        _
      %p642 = scmp.le.s32.totalorder 2, %s11
      // Predicated region
      $region93: #{tpu_custom_call.1} parent=5 // pred_check
        %p643 = pneg %p642
      $region94: #{tpu_custom_call.1} parent=5 // pred_check_branch
        %645 = sbr.rel (%p643) target = $region96
      $region95: #{tpu_custom_call.1} parent=5 // pred_region
        %s646 = ssub.s32 %s11, 2
        // Predicated region
        $region97: #{tpu_custom_call.1} parent=95 // pred_check
          %p647 = pneg %p150
        $region98: #{tpu_custom_call.1} parent=95 // pred_check_branch
          %649 = sbr.rel (%p647) target = $region100
        $region99: #{tpu_custom_call.1} parent=95 // pred_region
          %s650 = sand.u32 %s135, 1
          %s651 = sand.u32 %s135, 1
          %s652 = smul.addr %s651, 64
          %s653 = scalar_lea.vmem [#allocation2], %s652
        $region100: #{tpu_custom_call.1} parent=95 // pred_fallthru
          _
      $region96: #{tpu_custom_call.1} parent=5 // pred_fallthru
        _
    $region6: #{tpu_custom_call.1} parent=1 // loop_footer
      %s15 = sadd.s32 1, %s11
    $region7: #{tpu_custom_call.1} parent=1 // loop_footer_branch
      %10 = sbr.rel target = $region3
    $region8: #{tpu_custom_call.1} parent=1 // loop_exit
      _

</llo_original>
